<compile_context>
chip_gen: v7x
topology: tpu7x:2x2x1
jax: 0.10.0
libtpu: 0.0.40
codegen_flags: <defaults>
</compile_context>

<pallas_src>
import jax
import jax.numpy as jnp
from jax.experimental import pallas as pl
from jax.experimental.pallas import tpu as pltpu


_LANE = 128                           # TPU lane width
_MAX_LANE_WIDTH = 8192                # cap on lane-dense slab width
_TARGET_TILE_BYTES = 4 * 1024 * 1024  # ~4 MiB per tile buffer (all gens)
_VMEM_LIMIT_BYTES = 32 * 1024 * 1024  # == v7x scoped default; ample on v5e/v6e


def _copy_kernel(x_ref, o_ref):
    # Pure pass-through on the current VMEM tile (partial last block is
    # masked by Pallas on the store side).
    o_ref[...] = x_ref[...]


def _sublane_multiple(dtype) -> int:
    # Sub-32-bit dtypes pack along sublanes: the second-to-last block dim
    # must be a multiple of 8 (4-byte), 16 (2-byte) or 32 (1-byte) elements.
    itemsize = jnp.dtype(dtype).itemsize
    return {4: 8, 2: 16, 1: 32}.get(itemsize, 8)


@jax.jit
def _pallas_identity(x: jax.Array) -> jax.Array:
    """Identity copy of `x` through a tiled, pipelined Pallas TPU kernel."""
    orig_shape = x.shape
    dtype = x.dtype
    n = x.size
    itemsize = jnp.dtype(dtype).itemsize

    # --- Lane-dense slab width: widest multiple of 128 (capped at 8192) that
    #     divides n, so the reshape below is layout plumbing only (no extra
    #     HBM pass).  Worst case (n = 128 * prime) degrades to 128 lanes but
    #     stays fully tiled and unmasked.
    lane_w = 0
    if n >= _LANE and n % _LANE == 0:
        upper = min(_MAX_LANE_WIDTH, (n // _LANE) * _LANE)
        for w in range(upper, _LANE - 1, -_LANE):
            if n % w == 0:
                lane_w = w
                break
    if lane_w == 0:
        # TODO(synk): ragged sizes (not 128-divisible) would need a masked
        # last-tile kernel; since this copy is semantically an identity we
        # elide it rather than pay an extra pad/concat + slice HBM pass.
        return x

    rows = n // lane_w
    x2d = jnp.reshape(x, (rows, lane_w))

    # --- Fixed tile height (~4 MiB per buffer), dtype-aware sublane multiple.
    #     No divisibility requirement on `rows`: pl.cdiv grid + Pallas-masked
    #     partial last block keeps every input on the tiled/pipelined path.
    sublane = _sublane_multiple(dtype)
    max_tile_rows = max(sublane, _TARGET_TILE_BYTES // (lane_w * itemsize))
    if rows <= max_tile_rows:
        tile_rows = rows                     # small array: one (tiny) block
    else:
        tile_rows = max(sublane, (max_tile_rows // sublane) * sublane)

    grid = (pl.cdiv(rows, tile_rows),)

    y2d = pl.pallas_call(
        _copy_kernel,
        out_shape=jax.ShapeDtypeStruct((rows, lane_w), dtype),
        grid=grid,
        in_specs=[pl.BlockSpec((tile_rows, lane_w), lambda i: (i, 0))],
        out_specs=pl.BlockSpec((tile_rows, lane_w), lambda i: (i, 0)),
        input_output_aliases={0: 0},
        cost_estimate=pl.CostEstimate(
            flops=0, transcendentals=0, bytes_accessed=2 * n * itemsize),
        compiler_params=pltpu.CompilerParams(
            dimension_semantics=("parallel",),
            vmem_limit_bytes=_VMEM_LIMIT_BYTES,
        ),
    )(x2d)

    return jnp.reshape(y2d, orig_shape)


def dance_trans_forward(inputs: jax.Array):
    """Exact semantics of DanceTransModel.forward: returns None.

    The reference forward() body is an empty `return`; there is no compute
    to run, so no kernel is launched here (any copy would be dead work).
    """
    del inputs
    return None


if __name__ == "__main__":
    key = jax.random.PRNGKey(0)
    # Small NCHW input consistent with the module defaults:
    # (N=2, C=4, H=16, W=16), float32.
    x = jax.random.normal(key, (2, 4, 16, 16), dtype=jnp.float32)

    # Exercise the demonstrative Pallas identity kernel once and block on it.
    y = _pallas_identity(x)
    jax.block_until_ready(y)
    assert y.shape == x.shape and y.dtype == x.dtype
    assert bool(jnp.allclose(y, x))

    # Model-level forward mirrors the PyTorch module exactly (returns None).
    out = dance_trans_forward(x)
    assert out is None

    print("KERNEL_OK")
</pallas_src>

<mosaic_0001>
module attributes {stable_mosaic.version = 11 : i64} {
  func.func @_copy_kernel(%arg0: i32, %arg1: memref<1x2048xf32, #tpu.memory_space<vmem>>, %arg2: memref<1x2048xf32, #tpu.memory_space<vmem>>) attributes {dimension_semantics = [#tpu.dimension_semantics<parallel>], iteration_bounds = array<i64: 1>, scalar_prefetch = 0 : i64, scratch_operands = 0 : i64, tpu.core_type = #tpu.core_type<tc>, window_params = [{transform_indices = @transform_0, window_bounds = array<i64: 1, 2048>}, {transform_indices = @transform_1, window_bounds = array<i64: 1, 2048>}]} {
    %c0 = arith.constant 0 : index
    %c0_0 = arith.constant 0 : index
    %0 = vector.load %arg1[%c0, %c0_0] : memref<1x2048xf32, #tpu.memory_space<vmem>>, vector<1x2048xf32>
    %c0_1 = arith.constant 0 : index
    %c0_2 = arith.constant 0 : index
    %1 = vector.load %arg2[%c0_1, %c0_2] : memref<1x2048xf32, #tpu.memory_space<vmem>>, vector<1x2048xf32>
    tpu.vector_store %arg2[%c0_1, %c0_2], %0 {strides = array<i32>} : memref<1x2048xf32, #tpu.memory_space<vmem>>, vector<1x2048xf32>,
    return
  }
  func.func @transform_0(%arg0: i32) -> (i32, i32) {
    %c0_i32 = arith.constant 0 : i32
    %c0_i32_0 = arith.constant 0 : i32
    return %arg0, %c0_i32 : i32, i32
  }
  func.func @transform_1(%arg0: i32) -> (i32, i32) {
    %c0_i32 = arith.constant 0 : i32
    %c0_i32_0 = arith.constant 0 : i32
    return %arg0, %c0_i32 : i32, i32
  }
}

</mosaic_0001>

<llo_original>
// kernel: _pallas_identity.1
$region0: #{_pallas_identity.1}
  #allocation0 [shape = 'u32[]', space=smem, size = 0x4, offset = 0x4, fixed_abs, tag = 'smem constant byte address 0x4 - core index']
  #allocation1 [shape = 'u32[144,128]{1,0:T(1,128)}', space=vmem, size = 0x12000, scoped, tag = 'internal scratch']
  %s0 = inlined_call_operand.vmem [shape: f32[1,2048], index: 0, kind: input, shape index: {}, may-alias: {0,1}]
  %s1 = inlined_call_operand.vmem [shape: f32[1,2048], index: 1, kind: output, shape index: {}, may-alias: {0,1}]
  %s2 = sld [smem:[#allocation0]]
  $region14: #{_pallas_identity.1} parent=0
    _
  %s4 = ssub.s32 1, %s2
  %s5 = scalar_select 0, %s4, %s2
  // Predicated region
  $region2: #{_pallas_identity.1} parent=0 // pred_check
    _
  $region3: #{_pallas_identity.1} parent=0 // pred_check_branch
    %7 = sbr.rel (0) target = $region5
  $region4: #{_pallas_identity.1} parent=0 // pred_region
    _
  $region5: #{_pallas_identity.1} parent=0 // pred_fallthru
    _
  %v8 = vld [vmem:[%s0] sm:$0xff]
  %v9 = vld [vmem:[%s0 + $0x8] sm:$0xff]
  %10 = vst [vmem:[%s1] sm:$0xff] %v8
  %11 = vst [vmem:[%s1 + $0x8] sm:$0xff] %v9
  // Predicated region
  $region6: #{_pallas_identity.1} parent=0 // pred_check
    _
  $region7: #{_pallas_identity.1} parent=0 // pred_check_branch
    %13 = sbr.rel (0) target = $region9
  $region8: #{_pallas_identity.1} parent=0 // pred_region
    _
  $region9: #{_pallas_identity.1} parent=0 // pred_fallthru
    _
  // Predicated region
  $region10: #{_pallas_identity.1} parent=0 // pred_check
    _
  $region11: #{_pallas_identity.1} parent=0 // pred_check_branch
    %15 = sbr.rel (0) target = $region13
  $region12: #{_pallas_identity.1} parent=0 // pred_region
    _
  $region13: #{_pallas_identity.1} parent=0 // pred_fallthru
    _

</llo_original>
